<compile_context>
chip_gen: v6e
topology: v6e:2x2x1
jax: 0.10.0
libtpu: 0.0.40
codegen_flags: <defaults>
</compile_context>

<pallas_src>
import math

import jax
import jax.numpy as jnp
from jax.experimental import pallas as pl
from jax.experimental.pallas import tpu as pltpu


def _round_up(x, m):
    return (x + m - 1) // m * m


# ---------------------------------------------------------------------------
# Pallas kernel: fused 3-layer conditioned MLP (4 MXU dots total).
#   h1   = relu(x  @ W1           + b1)            x = [states | conditioning]
#   cc   = c @ W23c                                 (fused cond. for layers 2,3)
#   h2   = relu(h1 @ W2h + cc[:, :H2] + b2)
#   out  =      h2 @ W3h + cc[:, H2:] + b3
# ---------------------------------------------------------------------------
def _cbc_kernel(x_ref, c_ref,
                w1_ref, b1_ref,
                w2h_ref, b2_ref,
                w3h_ref, b3_ref,
                w23c_ref,
                o_ref):
    x = x_ref[...]          # (TB, Di+Dc) bf16
    c = c_ref[...]          # (TB, Dc)    bf16
    H2 = w2h_ref.shape[1]

    # Fused conditioning contribution for layers 2 and 3 (one small-K dot).
    cc = jnp.dot(c, w23c_ref[...], preferred_element_type=jnp.float32)  # (TB, H2+No_p)
    cc2 = cc[:, :H2]        # lane-aligned (256) static slice -> free
    cc3 = cc[:, H2:]

    h1 = jnp.dot(x, w1_ref[...], preferred_element_type=jnp.float32)
    h1 = jnp.maximum(h1 + b1_ref[...], 0.0).astype(jnp.bfloat16)

    h2 = jnp.dot(h1, w2h_ref[...], preferred_element_type=jnp.float32)
    h2 = jnp.maximum(h2 + cc2 + b2_ref[...], 0.0).astype(jnp.bfloat16)

    out = jnp.dot(h2, w3h_ref[...], preferred_element_type=jnp.float32)
    out = out + cc3 + b3_ref[...]
    o_ref[...] = out.astype(o_ref.dtype)


# ---------------------------------------------------------------------------
# Parameter init (matches torch.nn.Linear default U(-1/sqrt(fan_in), +..)):
# weights are stored as (fan_in, fan_out) == torch weight transposed, so that
# the forward is x @ W + b, with the cat ordering (hidden, conditioning).
# ---------------------------------------------------------------------------
def init_cbc_params(key, dim_input, dim_conditioning, dim_output, layers=(256, 256)):
    h1, h2 = layers
    dims_in = (dim_input + dim_conditioning, h1 + dim_conditioning, h2 + dim_conditioning)
    dims_out = (h1, h2, dim_output)
    params = {}
    for idx, (k, fi, fo) in enumerate(zip(jax.random.split(key, 3), dims_in, dims_out), 1):
        kw, kb = jax.random.split(k)
        bound = 1.0 / math.sqrt(fi)
        params[f"w{idx}"] = jax.random.uniform(kw, (fi, fo), jnp.float32, -bound, bound)
        params[f"b{idx}"] = jax.random.uniform(kb, (1, fo), jnp.float32, -bound, bound)
    return params


# ---------------------------------------------------------------------------
# One-time offline prep:
#   * W1 stays packed (rows = Di+Dc) -> layer-1 is one dot.
#   * Layer-2/3 weights split into hidden part + conditioning part; the two
#     conditioning parts are fused column-wise into one (Dc, H2+No_p) weight.
#   * Only the OUTPUT feature dim is zero-padded (to 128, lane-dense stores);
#     no K-dim padding anywhere. Weights bf16, biases f32.
# ---------------------------------------------------------------------------
def prepare_cbc_params(params, dim_input, dim_conditioning, dim_output, layers=(256, 256)):
    h1, h2 = layers
    assert h1 % 128 == 0 and h2 % 128 == 0, "hidden sizes must be multiples of 128"
    no_p = _round_up(dim_output, 128)

    w1, w2, w3 = params["w1"], params["w2"], params["w3"]

    def pad_cols(w):
        return jnp.pad(w, ((0, 0), (0, no_p - dim_output)))

    w3h = pad_cols(w3[:h2])                                  # (H2, No_p)
    w3c = pad_cols(w3[h2:])                                  # (Dc, No_p)
    w23c = jnp.concatenate([w2[h1:], w3c], axis=1)           # (Dc, H2+No_p)

    return {
        "w1": w1.astype(jnp.bfloat16),                       # (Di+Dc, H1)
        "b1": params["b1"],                                  # (1, H1) f32
        "w2h": w2[:h1].astype(jnp.bfloat16),                 # (H1, H2)
        "b2": params["b2"],                                  # (1, H2) f32
        "w3h": w3h.astype(jnp.bfloat16),                     # (H2, No_p)
        "b3": pad_cols(params["b3"]),                        # (1, No_p) f32
        "w23c": w23c.astype(jnp.bfloat16),                   # (Dc, H2+No_p)
    }


# ---------------------------------------------------------------------------
# Forward wrapper: pack inputs, pad batch only, run the batch-tiled kernel.
# ---------------------------------------------------------------------------
def cbc_forward_pallas(states, conditioning, prepared, dim_output, tb=1024):
    B, di = states.shape
    dc = conditioning.shape[1]
    H1 = prepared["w1"].shape[1]
    H2 = prepared["w2h"].shape[1]
    no_p = prepared["w3h"].shape[1]
    assert prepared["w1"].shape[0] == di + dc
    assert prepared["w23c"].shape == (dc, H2 + no_p)

    # Batch tile: multiple of 8 (sublane).  For medium batches force >= 2 grid
    # steps so v7x's two TensorCores both get work (batch axis is "parallel").
    b8 = _round_up(B, 8)
    TB = min(tb, b8)
    if b8 // TB < 2 and b8 >= 16:
        TB = _round_up((b8 + 1) // 2, 8)
    Bp = _round_up(B, TB)
    grid = (Bp // TB,)

    # Pack [states | conditioning] once at true width; pad only the batch dim.
    x = jnp.concatenate([states, conditioning], axis=1).astype(jnp.bfloat16)
    x = jnp.pad(x, ((0, Bp - B), (0, 0)))                    # (Bp, Di+Dc)
    c = jnp.pad(conditioning.astype(jnp.bfloat16), ((0, Bp - B), (0, 0)))  # (Bp, Dc)

    flops = 2 * Bp * ((di + dc) * H1 + H1 * H2 + dc * (H2 + no_p) + H2 * no_p)
    weight_bytes = sum(int(v.size) * v.dtype.itemsize for v in prepared.values())
    bytes_accessed = int(x.size) * 2 + int(c.size) * 2 + weight_bytes + Bp * no_p * 2

    def resident(shape):
        # Same block index every grid step -> loaded once, stays in VMEM.
        return pl.BlockSpec(shape, lambda i: (0, 0))

    out = pl.pallas_call(
        _cbc_kernel,
        out_shape=jax.ShapeDtypeStruct((Bp, no_p), jnp.bfloat16),
        grid_spec=pltpu.PrefetchScalarGridSpec(
            num_scalar_prefetch=0,
            grid=grid,
            in_specs=[
                pl.BlockSpec((TB, di + dc), lambda i: (i, 0)),   # packed input tile
                pl.BlockSpec((TB, dc), lambda i: (i, 0)),        # conditioning tile
                resident((di + dc, H1)), resident((1, H1)),
                resident((H1, H2)), resident((1, H2)),
                resident((H2, no_p)), resident((1, no_p)),
                resident((dc, H2 + no_p)),
            ],
            out_specs=pl.BlockSpec((TB, no_p), lambda i: (i, 0)),
        ),
        compiler_params=pltpu.CompilerParams(
            dimension_semantics=("parallel",),     # shard batch tiles on v7x's 2 TCs
            vmem_limit_bytes=16 * 1024 * 1024,     # ~3-4 MiB actual footprint at TB=1024
        ),
        cost_estimate=pl.CostEstimate(
            flops=flops, transcendentals=0, bytes_accessed=bytes_accessed),
    )(x, c,
      prepared["w1"], prepared["b1"],
      prepared["w2h"], prepared["b2"],
      prepared["w3h"], prepared["b3"],
      prepared["w23c"])

    return out[:B, :dim_output].astype(jnp.float32)


if __name__ == "__main__":
    key = jax.random.PRNGKey(0)

    dim_input, dim_conditioning, dim_output = 32, 16, 8
    layers = (256, 256)
    B = 2

    ks, kc, kp = jax.random.split(key, 3)
    states = jax.random.normal(ks, (B, dim_input), jnp.float32)
    conditioning = jax.random.normal(kc, (B, dim_conditioning), jnp.float32)

    params = init_cbc_params(kp, dim_input, dim_conditioning, dim_output, layers)
    prepared = prepare_cbc_params(params, dim_input, dim_conditioning, dim_output, layers)

    out = cbc_forward_pallas(states, conditioning, prepared, dim_output)
    out = jax.block_until_ready(out)

    # Pure-JAX f32 reference following the exact PyTorch concat semantics.
    x = jnp.concatenate([states, conditioning], axis=1)
    h1 = jnp.maximum(x @ params["w1"] + params["b1"], 0.0)
    h1 = jnp.concatenate([h1, conditioning], axis=1)
    h2 = jnp.maximum(h1 @ params["w2"] + params["b2"], 0.0)
    h2 = jnp.concatenate([h2, conditioning], axis=1)
    ref = h2 @ params["w3"] + params["b3"]

    assert out.shape == (B, dim_output)
    max_err = float(jnp.max(jnp.abs(out - ref)))
    # bf16 operands/output with f32 accumulation: tolerate ~1e-2 scale error.
    assert jnp.allclose(out, ref, atol=5e-2, rtol=5e-2), max_err

    print("KERNEL_OK")
</pallas_src>

<mosaic_0001>
module attributes {stable_mosaic.version = 11 : i64} {
  func.func @_cbc_kernel(%arg0: i32, %arg1: memref<8x48xbf16, #tpu.memory_space<vmem>>, %arg2: memref<8x16xbf16, #tpu.memory_space<vmem>>, %arg3: memref<48x256xbf16, #tpu.memory_space<vmem>>, %arg4: memref<1x256xf32, #tpu.memory_space<vmem>>, %arg5: memref<256x256xbf16, #tpu.memory_space<vmem>>, %arg6: memref<1x256xf32, #tpu.memory_space<vmem>>, %arg7: memref<256x128xbf16, #tpu.memory_space<vmem>>, %arg8: memref<1x128xf32, #tpu.memory_space<vmem>>, %arg9: memref<16x384xbf16, #tpu.memory_space<vmem>>, %arg10: memref<8x128xbf16, #tpu.memory_space<vmem>>) attributes {dimension_semantics = [#tpu.dimension_semantics<parallel>], iteration_bounds = array<i64: 1>, scalar_prefetch = 0 : i64, scratch_operands = 0 : i64, tpu.core_type = #tpu.core_type<tc>, window_params = [{transform_indices = @transform_0, window_bounds = array<i64: 8, 48>}, {transform_indices = @transform_1, window_bounds = array<i64: 8, 16>}, {pipeline_mode = #tpu.pipeline_mode<synchronous>, transform_indices = @transform_2, window_bounds = array<i64: 48, 256>}, {pipeline_mode = #tpu.pipeline_mode<synchronous>, transform_indices = @transform_3, window_bounds = array<i64: 1, 256>}, {pipeline_mode = #tpu.pipeline_mode<synchronous>, transform_indices = @transform_4, window_bounds = array<i64: 256, 256>}, {pipeline_mode = #tpu.pipeline_mode<synchronous>, transform_indices = @transform_5, window_bounds = array<i64: 1, 256>}, {pipeline_mode = #tpu.pipeline_mode<synchronous>, transform_indices = @transform_6, window_bounds = array<i64: 256, 128>}, {pipeline_mode = #tpu.pipeline_mode<synchronous>, transform_indices = @transform_7, window_bounds = array<i64: 1, 128>}, {pipeline_mode = #tpu.pipeline_mode<synchronous>, transform_indices = @transform_8, window_bounds = array<i64: 16, 384>}, {transform_indices = @transform_9, window_bounds = array<i64: 8, 128>}]} {
    %c0 = arith.constant 0 : index
    %c0_0 = arith.constant 0 : index
    %0 = vector.load %arg1[%c0, %c0_0] : memref<8x48xbf16, #tpu.memory_space<vmem>>, vector<8x48xbf16>
    %c0_1 = arith.constant 0 : index
    %c0_2 = arith.constant 0 : index
    %1 = vector.load %arg2[%c0_1, %c0_2] : memref<8x16xbf16, #tpu.memory_space<vmem>>, vector<8x16xbf16>
    %c0_3 = arith.constant 0 : index
    %c0_4 = arith.constant 0 : index
    %2 = vector.load %arg9[%c0_3, %c0_4] : memref<16x384xbf16, #tpu.memory_space<vmem>>, vector<16x384xbf16>
    %cst = arith.constant dense<0.000000e+00> : vector<8x384xf32>
    %3 = tpu.matmul %1, %2, %cst {dimension_numbers = #tpu.dot_dimension_numbers<[1], [0], [0], [1], [0, 0, 1, 1], [], []>} : vector<8x16xbf16>, vector<16x384xbf16>, vector<8x384xf32> -> vector<8x384xf32>
    %4 = vector.extract_strided_slice %3 {offsets = [0, 0], sizes = [8, 256], strides = [1, 1]} : vector<8x384xf32> to vector<8x256xf32>
    %5 = vector.extract_strided_slice %3 {offsets = [0, 256], sizes = [8, 128], strides = [1, 1]} : vector<8x384xf32> to vector<8x128xf32>
    %c0_5 = arith.constant 0 : index
    %c0_6 = arith.constant 0 : index
    %6 = vector.load %arg3[%c0_5, %c0_6] : memref<48x256xbf16, #tpu.memory_space<vmem>>, vector<48x256xbf16>
    %cst_7 = arith.constant dense<0.000000e+00> : vector<8x256xf32>
    %7 = tpu.matmul %0, %6, %cst_7 {dimension_numbers = #tpu.dot_dimension_numbers<[1], [0], [0], [1], [0, 0, 1, 1], [], []>} : vector<8x48xbf16>, vector<48x256xbf16>, vector<8x256xf32> -> vector<8x256xf32>
    %c0_8 = arith.constant 0 : index
    %c0_9 = arith.constant 0 : index
    %8 = vector.load %arg4[%c0_8, %c0_9] : memref<1x256xf32, #tpu.memory_space<vmem>>, vector<1x256xf32>
    %9 = vector.broadcast %8 : vector<1x256xf32> to vector<8x256xf32>
    %10 = arith.addf %7, %9 : vector<8x256xf32>
    %cst_10 = arith.constant 0.000000e+00 : f32
    %11 = vector.broadcast %cst_10 : f32 to vector<8x256xf32>
    %12 = arith.maximumf %10, %11 : vector<8x256xf32>
    %13 = arith.truncf %12 : vector<8x256xf32> to vector<8x256xbf16>
    %c0_11 = arith.constant 0 : index
    %c0_12 = arith.constant 0 : index
    %14 = vector.load %arg5[%c0_11, %c0_12] : memref<256x256xbf16, #tpu.memory_space<vmem>>, vector<256x256xbf16>
    %cst_13 = arith.constant dense<0.000000e+00> : vector<8x256xf32>
    %15 = tpu.matmul %13, %14, %cst_13 {dimension_numbers = #tpu.dot_dimension_numbers<[1], [0], [0], [1], [0, 0, 1, 1], [], []>} : vector<8x256xbf16>, vector<256x256xbf16>, vector<8x256xf32> -> vector<8x256xf32>
    %16 = arith.addf %15, %4 : vector<8x256xf32>
    %c0_14 = arith.constant 0 : index
    %c0_15 = arith.constant 0 : index
    %17 = vector.load %arg6[%c0_14, %c0_15] : memref<1x256xf32, #tpu.memory_space<vmem>>, vector<1x256xf32>
    %18 = vector.broadcast %17 : vector<1x256xf32> to vector<8x256xf32>
    %19 = arith.addf %16, %18 : vector<8x256xf32>
    %cst_16 = arith.constant 0.000000e+00 : f32
    %20 = vector.broadcast %cst_16 : f32 to vector<8x256xf32>
    %21 = arith.maximumf %19, %20 : vector<8x256xf32>
    %22 = arith.truncf %21 : vector<8x256xf32> to vector<8x256xbf16>
    %c0_17 = arith.constant 0 : index
    %c0_18 = arith.constant 0 : index
    %23 = vector.load %arg7[%c0_17, %c0_18] : memref<256x128xbf16, #tpu.memory_space<vmem>>, vector<256x128xbf16>
    %cst_19 = arith.constant dense<0.000000e+00> : vector<8x128xf32>
    %24 = tpu.matmul %22, %23, %cst_19 {dimension_numbers = #tpu.dot_dimension_numbers<[1], [0], [0], [1], [0, 0, 1, 1], [], []>} : vector<8x256xbf16>, vector<256x128xbf16>, vector<8x128xf32> -> vector<8x128xf32>
    %25 = arith.addf %24, %5 : vector<8x128xf32>
    %c0_20 = arith.constant 0 : index
    %c0_21 = arith.constant 0 : index
    %26 = vector.load %arg8[%c0_20, %c0_21] : memref<1x128xf32, #tpu.memory_space<vmem>>, vector<1x128xf32>
    %27 = vector.broadcast %26 : vector<1x128xf32> to vector<8x128xf32>
    %28 = arith.addf %25, %27 : vector<8x128xf32>
    %29 = arith.truncf %28 : vector<8x128xf32> to vector<8x128xbf16>
    %c0_22 = arith.constant 0 : index
    %c0_23 = arith.constant 0 : index
    %30 = vector.load %arg10[%c0_22, %c0_23] : memref<8x128xbf16, #tpu.memory_space<vmem>>, vector<8x128xbf16>
    tpu.vector_store %arg10[%c0_22, %c0_23], %29 {strides = array<i32>} : memref<8x128xbf16, #tpu.memory_space<vmem>>, vector<8x128xbf16>,
    return
  }
  func.func @transform_0(%arg0: i32) -> (i32, i32) {
    %c0_i32 = arith.constant 0 : i32
    %c0_i32_0 = arith.constant 0 : i32
    return %arg0, %c0_i32 : i32, i32
  }
  func.func @transform_1(%arg0: i32) -> (i32, i32) {
    %c0_i32 = arith.constant 0 : i32
    %c0_i32_0 = arith.constant 0 : i32
    return %arg0, %c0_i32 : i32, i32
  }
  func.func @transform_2(%arg0: i32) -> (i32, i32) {
    %c0_i32 = arith.constant 0 : i32
    %c0_i32_0 = arith.constant 0 : i32
    %c0_i32_1 = arith.constant 0 : i32
    return %c0_i32, %c0_i32_0 : i32, i32
  }
  func.func @transform_3(%arg0: i32) -> (i32, i32) {
    %c0_i32 = arith.constant 0 : i32
    %c0_i32_0 = arith.constant 0 : i32
    %c0_i32_1 = arith.constant 0 : i32
    return %c0_i32, %c0_i32_0 : i32, i32
  }
  func.func @transform_4(%arg0: i32) -> (i32, i32) {
    %c0_i32 = arith.constant 0 : i32
    %c0_i32_0 = arith.constant 0 : i32
    %c0_i32_1 = arith.constant 0 : i32
    return %c0_i32, %c0_i32_0 : i32, i32
  }
  func.func @transform_5(%arg0: i32) -> (i32, i32) {
    %c0_i32 = arith.constant 0 : i32
    %c0_i32_0 = arith.constant 0 : i32
    %c0_i32_1 = arith.constant 0 : i32
    return %c0_i32, %c0_i32_0 : i32, i32
  }
  func.func @transform_6(%arg0: i32) -> (i32, i32) {
    %c0_i32 = arith.constant 0 : i32
    %c0_i32_0 = arith.constant 0 : i32
    %c0_i32_1 = arith.constant 0 : i32
    return %c0_i32, %c0_i32_0 : i32, i32
  }
  func.func @transform_7(%arg0: i32) -> (i32, i32) {
    %c0_i32 = arith.constant 0 : i32
    %c0_i32_0 = arith.constant 0 : i32
    %c0_i32_1 = arith.constant 0 : i32
    return %c0_i32, %c0_i32_0 : i32, i32
  }
  func.func @transform_8(%arg0: i32) -> (i32, i32) {
    %c0_i32 = arith.constant 0 : i32
    %c0_i32_0 = arith.constant 0 : i32
    %c0_i32_1 = arith.constant 0 : i32
    return %c0_i32, %c0_i32_0 : i32, i32
  }
  func.func @transform_9(%arg0: i32) -> (i32, i32) {
    %c0_i32 = arith.constant 0 : i32
    %c0_i32_0 = arith.constant 0 : i32
    return %arg0, %c0_i32 : i32, i32
  }
}

</mosaic_0001>

<llo_original>
// kernel: tpu_custom_call.1
$region0: #{tpu_custom_call.1}
  #allocation0 [shape = 'u32[]', space=smem, size = 0x4, offset = 0x4, fixed_abs, tag = 'smem constant byte address 0x4 - core index']
  #allocation1 [shape = 'u32[144,128]{1,0:T(1,128)}', space=vmem, size = 0x12000, scoped, tag = 'internal scratch']
  %s0 = inlined_call_operand.hbm [shape: bf16[8,48], index: 0, kind: input, shape index: {}]
  %s1 = inlined_call_operand.hbm [shape: bf16[8,16], index: 1, kind: input, shape index: {}]
  %s2 = inlined_call_operand.hbm [shape: bf16[48,256], index: 2, kind: input, shape index: {}]
  %s3 = inlined_call_operand.vmem [shape: f32[1,256], index: 3, kind: input, shape index: {}]
  %s4 = inlined_call_operand.hbm [shape: bf16[256,256], index: 4, kind: input, shape index: {}]
  %s5 = inlined_call_operand.vmem [shape: f32[1,256], index: 5, kind: input, shape index: {}]
  %s6 = inlined_call_operand.hbm [shape: bf16[256,128], index: 6, kind: input, shape index: {}]
  %s7 = inlined_call_operand.vmem [shape: f32[1,128], index: 7, kind: input, shape index: {}]
  %s8 = inlined_call_operand.hbm [shape: bf16[16,384], index: 8, kind: input, shape index: {}]
  %s9 = inlined_call_operand.hbm [shape: bf16[8,128], index: 9, kind: output, shape index: {}]
  %s10 = sld [smem:[#allocation0]]
  $region70: #{tpu_custom_call.1} parent=0
    _
  %s12 = ssub.s32 1, %s10
  %s13 = scalar_select 0, %s12, %s10
  $region1: #{tpu_custom_call.1} parent=0
    #allocation2 [shape = 'u8[2048]{0}', space=vmem, size = 0x800, scoped, tag = 'input window, operand 0, single buffered']
    #allocation3 [shape = 's32[1]{0}', space=sflag, size = 0x4, scoped, tag = 'scoped memory for tpu_custom_call.1']
    #allocation4 [shape = 's32[1]{0}', space=sflag, size = 0x4, scoped, tag = 'scoped memory for tpu_custom_call.1']
    #allocation5 [shape = 'u8[2048]{0}', space=vmem, size = 0x800, scoped, tag = 'input window, operand 1, single buffered']
    #allocation6 [shape = 's32[1]{0}', space=sflag, size = 0x4, scoped, tag = 'scoped memory for tpu_custom_call.1']
    #allocation7 [shape = 'u8[24576]{0}', space=vmem, size = 0x6000, scoped, tag = 'input window, operand 2, single buffered']
    #allocation8 [shape = 'u8[131072]{0}', space=vmem, size = 0x20000, scoped, tag = 'input window, operand 4, single buffered']
    #allocation9 [shape = 's32[1]{0}', space=sflag, size = 0x4, scoped, tag = 'scoped memory for tpu_custom_call.1']
    #allocation10 [shape = 'u8[65536]{0}', space=vmem, size = 0x10000, scoped, tag = 'input window, operand 6, single buffered']
    #allocation11 [shape = 'u8[12288]{0}', space=vmem, size = 0x3000, scoped, tag = 'input window, operand 8, single buffered']
    #allocation12 [shape = 's32[1]{0}', space=sflag, size = 0x4, scoped, tag = 'scoped memory for tpu_custom_call.1']
    #allocation13 [shape = 'u8[2048]{0}', space=vmem, size = 0x800, scoped, tag = 'output window, operand 0, single buffered']
    %14 = vsyncpa [#allocation3], 0
    %15 = vsyncpa [#allocation6], 0
    %16 = vsyncpa [#allocation9], 0
    %17 = vsyncpa [#allocation12], 0
    %18 = vsyncpa [#allocation4], 0
    // Predicated region
    $region2: #{tpu_custom_call.1} parent=1 // pred_check
      _
    $region3: #{tpu_custom_call.1} parent=1 // pred_check_branch
      %20 = sbr.rel (0) target = $region5
    $region4: #{tpu_custom_call.1} parent=1 // pred_region
      %s22 = ssub.s32 64, 64
      %23 = vsyncadd [#allocation3], %s22
      %s25 = sshll.u32 [#allocation2], 4
      %s26 = int_to_ptr.vmem [resolvable:$true] %s25
      %28 = dma.hbm_to_vmem [thread:$0]  %s0, 64, %s26, [#allocation3]
    $region5: #{tpu_custom_call.1} parent=1 // pred_fallthru
      _
    // Predicated region
    $region6: #{tpu_custom_call.1} parent=1 // pred_check
      _
    $region7: #{tpu_custom_call.1} parent=1 // pred_check_branch
      %30 = sbr.rel (0) target = $region9
    $region8: #{tpu_custom_call.1} parent=1 // pred_region
      %s32 = ssub.s32 64, 64
      %33 = vsyncadd [#allocation6], %s32
      %s35 = sshll.u32 [#allocation5], 4
      %s36 = int_to_ptr.vmem [resolvable:$true] %s35
      %38 = dma.hbm_to_vmem [thread:$0]  %s1, 64, %s36, [#allocation6]
    $region9: #{tpu_custom_call.1} parent=1 // pred_fallthru
      _
    // Predicated region
    $region10: #{tpu_custom_call.1} parent=1 // pred_check
      _
    $region11: #{tpu_custom_call.1} parent=1 // pred_check_branch
      %40 = sbr.rel (0) target = $region13
    $region12: #{tpu_custom_call.1} parent=1 // pred_region
      %s42 = ssub.s32 768, 768
      %43 = vsyncadd [#allocation6], %s42
      %s44 = sshll.u32 [#allocation7], 4
      %s45 = int_to_ptr.vmem [resolvable:$true] %s44
      %50 = dma.hbm_to_vmem [thread:$0]  %s2, 768, %s45, [#allocation6], 128, 128, 8
    $region13: #{tpu_custom_call.1} parent=1 // pred_fallthru
      _
    // Predicated region
    $region14: #{tpu_custom_call.1} parent=1 // pred_check
      _
    $region15: #{tpu_custom_call.1} parent=1 // pred_check_branch
      %52 = sbr.rel (0) target = $region17
    $region16: #{tpu_custom_call.1} parent=1 // pred_region
      _
    $region17: #{tpu_custom_call.1} parent=1 // pred_fallthru
      _
    // Predicated region
    $region18: #{tpu_custom_call.1} parent=1 // pred_check
      _
    $region19: #{tpu_custom_call.1} parent=1 // pred_check_branch
      %54 = sbr.rel (0) target = $region21
    $region20: #{tpu_custom_call.1} parent=1 // pred_region
      %s56 = ssub.s32 4096, 4096
      %57 = vsyncadd [#allocation9], %s56
      %s58 = sshll.u32 [#allocation8], 4
      %s59 = int_to_ptr.vmem [resolvable:$true] %s58
      %64 = dma.hbm_to_vmem [thread:$0]  %s4, 4096, %s59, [#allocation9], 128, 128, 8
    $region21: #{tpu_custom_call.1} parent=1 // pred_fallthru
      _
    // Predicated region
    $region22: #{tpu_custom_call.1} parent=1 // pred_check
      _
    $region23: #{tpu_custom_call.1} parent=1 // pred_check_branch
      %66 = sbr.rel (0) target = $region25
    $region24: #{tpu_custom_call.1} parent=1 // pred_region
      _
    $region25: #{tpu_custom_call.1} parent=1 // pred_fallthru
      _
    // Predicated region
    $region26: #{tpu_custom_call.1} parent=1 // pred_check
      _
    $region27: #{tpu_custom_call.1} parent=1 // pred_check_branch
      %68 = sbr.rel (0) target = $region29
    $region28: #{tpu_custom_call.1} parent=1 // pred_region
      %s70 = ssub.s32 2048, 2048
      %71 = vsyncadd [#allocation9], %s70
      %s72 = sshll.u32 [#allocation10], 4
      %s73 = int_to_ptr.vmem [resolvable:$true] %s72
      %78 = dma.hbm_to_vmem [thread:$0]  %s6, 2048, %s73, [#allocation9], 64, 64, 4
    $region29: #{tpu_custom_call.1} parent=1 // pred_fallthru
      _
    // Predicated region
    $region30: #{tpu_custom_call.1} parent=1 // pred_check
      _
    $region31: #{tpu_custom_call.1} parent=1 // pred_check_branch
      %80 = sbr.rel (0) target = $region33
    $region32: #{tpu_custom_call.1} parent=1 // pred_region
      _
    $region33: #{tpu_custom_call.1} parent=1 // pred_fallthru
      _
    // Predicated region
    $region34: #{tpu_custom_call.1} parent=1 // pred_check
      _
    $region35: #{tpu_custom_call.1} parent=1 // pred_check_branch
      %82 = sbr.rel (0) target = $region37
    $region36: #{tpu_custom_call.1} parent=1 // pred_region
      %s84 = ssub.s32 384, 384
      %85 = vsyncadd [#allocation12], %s84
      %s86 = sshll.u32 [#allocation11], 4
      %s87 = int_to_ptr.vmem [resolvable:$true] %s86
      %92 = dma.hbm_to_vmem [thread:$0]  %s8, 384, %s87, [#allocation12], 192, 192, 12
    $region37: #{tpu_custom_call.1} parent=1 // pred_fallthru
      _
    // Predicated region
    $region38: #{tpu_custom_call.1} parent=1 // pred_check
      _
    $region39: #{tpu_custom_call.1} parent=1 // pred_check_branch
      %94 = sbr.rel (0) target = $region41
    $region40: #{tpu_custom_call.1} parent=1 // pred_region
      %95 = dma.done [#allocation3], 64
    $region41: #{tpu_custom_call.1} parent=1 // pred_fallthru
      _
    // Predicated region
    $region42: #{tpu_custom_call.1} parent=1 // pred_check
      _
    $region43: #{tpu_custom_call.1} parent=1 // pred_check_branch
      %97 = sbr.rel (0) target = $region45
    $region44: #{tpu_custom_call.1} parent=1 // pred_region
      %98 = dma.done [#allocation6], 64
    $region45: #{tpu_custom_call.1} parent=1 // pred_fallthru
      _
    // Predicated region
    $region46: #{tpu_custom_call.1} parent=1 // pred_check
      _
    $region47: #{tpu_custom_call.1} parent=1 // pred_check_branch
      %100 = sbr.rel (0) target = $region49
    $region48: #{tpu_custom_call.1} parent=1 // pred_region
      %101 = dma.done [#allocation6], 768
    $region49: #{tpu_custom_call.1} parent=1 // pred_fallthru
      _
    // Predicated region
    $region50: #{tpu_custom_call.1} parent=1 // pred_check
      _
    $region51: #{tpu_custom_call.1} parent=1 // pred_check_branch
      %103 = sbr.rel (0) target = $region53
    $region52: #{tpu_custom_call.1} parent=1 // pred_region
      %104 = dma.done [#allocation9], 4096
    $region53: #{tpu_custom_call.1} parent=1 // pred_fallthru
      _
    // Predicated region
    $region54: #{tpu_custom_call.1} parent=1 // pred_check
      _
    $region55: #{tpu_custom_call.1} parent=1 // pred_check_branch
      %106 = sbr.rel (0) target = $region57
    $region56: #{tpu_custom_call.1} parent=1 // pred_region
      %107 = dma.done [#allocation9], 2048
    $region57: #{tpu_custom_call.1} parent=1 // pred_fallthru
      _
    // Predicated region
    $region58: #{tpu_custom_call.1} parent=1 // pred_check
      _
    $region59: #{tpu_custom_call.1} parent=1 // pred_check_branch
      %109 = sbr.rel (0) target = $region61
    $region60: #{tpu_custom_call.1} parent=1 // pred_region
      %110 = dma.done [#allocation12], 384
    $region61: #{tpu_custom_call.1} parent=1 // pred_fallthru
      _
    %v112 = vld [vmem:[#allocation2] sm:$0xf]
    %v113 = vld [vmem:[#allocation5] sm:$0xf]
    %v114 = vld [vmem:[#allocation11] sm:$0xff]
    %v115 = vld [vmem:[#allocation11 + $0x8] sm:$0xf]
    %v116 = vld [vmem:[#allocation11 + $0xc] sm:$0xff]
    %v117 = vld [vmem:[#allocation11 + $0x14] sm:$0xf]
    %v122 = vunpack.c.l.b16 %v114
    %v123 = vunpack.c.h.b16 %v114
    %v124 = vunpack.c.l.b16 %v115
    %v125 = vunpack.c.l.b16 %v116
    %v126 = vunpack.c.h.b16 %v116
    %v127 = vunpack.c.l.b16 %v117
    %v128 = vpack.c.b16 %v125, %v122
    %v129 = vpack.c.b16 %v126, %v123
    %v130 = vpack.c.b16 %v127, %v124
    %vm134 = vcmask 130048
    %v136 = vsel %vm134, %v113, 0
    %138 = vmatprep.subr.bf16.mxu0 0
    %139 = vmatpush1.bf16.msra.mxu0 0
    %140 = vmatprep.subr.bf16.mxu0 0
    %141 = vmatpush1.bf16.msra.mxu0 0
    %142 = vmatprep.subr.bf16.mxu0 0
    %143 = vmatpush1.bf16.msra.mxu0 0
    %144 = vmatprep.subr.bf16.mxu0 0
    %145 = vmatpush1.bf16.msra.mxu0 0
    %146 = vmatprep.subr.bf16.mxu0 0
    %147 = vmatpush1.bf16.msra.mxu0 0
    %148 = vmatprep.subr.bf16.mxu0 0
    %149 = vmatpush1.bf16.msra.mxu0 0
    %150 = vmatprep.subr.bf16.mxu0 0
    %151 = vmatpush1.bf16.msra.mxu0 0
    %152 = vmatprep.subr.bf16.mxu0 %v129
    %153 = vmatpush1.bf16.msra.mxu0 %v128
    %154 = vmatprep.subr.bf16.mxu0 0
    %155 = vmatpush2.bf16.msra.mxu0 0
    %156 = vmatprep.subr.bf16.mxu0 0
    %157 = vmatpush2.bf16.msra.mxu0 0
    %158 = vmatprep.subr.bf16.mxu0 0
    %159 = vmatpush2.bf16.msra.mxu0 0
    %160 = vmatprep.subr.bf16.mxu0 0
    %161 = vmatpush2.bf16.msra.mxu0 0
    %162 = vmatprep.subr.bf16.mxu0 0
    %163 = vmatpush2.bf16.msra.mxu0 0
    %164 = vmatprep.subr.bf16.mxu0 0
    %165 = vmatpush2.bf16.msra.mxu0 0
    %166 = vmatprep.subr.bf16.mxu0 0
    %167 = vmatpush2.bf16.msra.mxu0 0
    %168 = vmatprep.subr.bf16.mxu0 0
    %169 = vmatpush2.bf16.msra.mxu0 0
    %170 = vmatprep.mubr.bf16.mxu0 0
    %171 = vmatmul.mubr.bf16.gmra.mxu0 %v136
    %v172 = vpop.f32.mrf.mxu0
    %v173 = vadd.f32 0.0, %v172
    %v174 = vpop.f32.mrf.mxu0
    %v175 = vadd.f32 0.0, %v174
    %v176 = vpop.f32.mrf.mxu0
    %v177 = vpop.f32.mrf.mxu0
    %178 = vdwg.mxu0
    %179 = vmatprep.subr.bf16.mxu0 0
    %180 = vmatpush1.bf16.msra.mxu0 0
    %181 = vmatprep.subr.bf16.mxu0 0
    %182 = vmatpush1.bf16.msra.mxu0 0
    %183 = vmatprep.subr.bf16.mxu0 0
    %184 = vmatpush1.bf16.msra.mxu0 0
    %185 = vmatprep.subr.bf16.mxu0 0
    %186 = vmatpush1.bf16.msra.mxu0 0
    %187 = vmatprep.subr.bf16.mxu0 0
    %188 = vmatpush1.bf16.msra.mxu0 0
    %189 = vmatprep.subr.bf16.mxu0 0
    %190 = vmatpush1.bf16.msra.mxu0 0
    %191 = vmatprep.subr.bf16.mxu0 0
    %192 = vmatpush1.bf16.msra.mxu0 0
    %193 = vmatprep.subr.bf16.mxu0 0
    %194 = vmatpush1.bf16.msra.mxu0 %v130
    %195 = vmatprep.subr.bf16.mxu0 0
    %196 = vmatpush2.bf16.msra.mxu0 0
    %197 = vmatprep.subr.bf16.mxu0 0
    %198 = vmatpush2.bf16.msra.mxu0 0
    %199 = vmatprep.subr.bf16.mxu0 0
    %200 = vmatpush2.bf16.msra.mxu0 0
    %201 = vmatprep.subr.bf16.mxu0 0
    %202 = vmatpush2.bf16.msra.mxu0 0
    %203 = vmatprep.subr.bf16.mxu0 0
    %204 = vmatpush2.bf16.msra.mxu0 0
    %205 = vmatprep.subr.bf16.mxu0 0
    %206 = vmatpush2.bf16.msra.mxu0 0
    %207 = vmatprep.subr.bf16.mxu0 0
    %208 = vmatpush2.bf16.msra.mxu0 0
    %209 = vmatprep.subr.bf16.mxu0 0
    %210 = vmatpush2.bf16.msra.mxu0 0
    %211 = vmatprep.mubr.bf16.mxu0 0
    %212 = vmatmul.mubr.bf16.gmra.mxu0 %v136
    %v213 = vpop.f32.mrf.mxu0
    %v214 = vadd.f32 0.0, %v213
    %v215 = vpop.f32.mrf.mxu0
    %v216 = vpop.f32.mrf.mxu0
    %v217 = vpop.f32.mrf.mxu0
    %218 = vdwg.mxu0
    %v219 = vld [vmem:[#allocation7] sm:$0xff]
    %v220 = vld [vmem:[#allocation7 + $0x8] sm:$0xff]
    %v221 = vld [vmem:[#allocation7 + $0x10] sm:$0xff]
    %v222 = vld [vmem:[#allocation7 + $0x18] sm:$0xff]
    %v223 = vld [vmem:[#allocation7 + $0x20] sm:$0xff]
    %v224 = vld [vmem:[#allocation7 + $0x28] sm:$0xff]
    %v225 = vld [vmem:[%s3] sm:$0x3]
    %v227 = vlaneseq
    %v228 = vshrl.u32 %v227, 7
    %v229 = vsub.s32 0, %v228
    %v230 = vrot.slane %v225, %v229
    %v231 = vlaneseq
    %v232 = vshrl.u32 %v231, 7
    %v233 = vsub.s32 1, %v232
    %v234 = vrot.slane %v225, %v233
    %v243 = vunpack.c.l.b16 %v219
    %v244 = vunpack.c.h.b16 %v219
    %v245 = vunpack.c.l.b16 %v220
    %v246 = vunpack.c.h.b16 %v220
    %v247 = vunpack.c.l.b16 %v221
    %v248 = vunpack.c.h.b16 %v221
    %v249 = vunpack.c.l.b16 %v222
    %v250 = vunpack.c.h.b16 %v222
    %v251 = vunpack.c.l.b16 %v223
    %v252 = vunpack.c.h.b16 %v223
    %v253 = vunpack.c.l.b16 %v224
    %v254 = vunpack.c.h.b16 %v224
    %v255 = vpack.c.b16 %v245, %v243
    %v256 = vpack.c.b16 %v246, %v244
    %v257 = vpack.c.b16 %v249, %v247
    %v258 = vpack.c.b16 %v250, %v248
    %v259 = vpack.c.b16 %v253, %v251
    %v260 = vpack.c.b16 %v254, %v252
    %vm267 = vcmask 392192
    %v269 = vsel %vm267, %v112, 0
    %271 = vmatprep.subr.bf16.mxu0 0
    %272 = vmatpush1.bf16.msra.mxu0 0
    %273 = vmatprep.subr.bf16.mxu0 0
    %274 = vmatpush1.bf16.msra.mxu0 0
    %275 = vmatprep.subr.bf16.mxu0 0
    %276 = vmatpush1.bf16.msra.mxu0 0
    %277 = vmatprep.subr.bf16.mxu0 0
    %278 = vmatpush1.bf16.msra.mxu0 0
    %279 = vmatprep.subr.bf16.mxu0 0
    %280 = vmatpush1.bf16.msra.mxu0 0
    %281 = vmatprep.subr.bf16.mxu0 %v260
    %282 = vmatpush1.bf16.msra.mxu0 %v259
    %283 = vmatprep.subr.bf16.mxu0 %v258
    %284 = vmatpush1.bf16.msra.mxu0 %v257
    %285 = vmatprep.subr.bf16.mxu0 %v256
    %286 = vmatpush1.bf16.msra.mxu0 %v255
    %287 = vmatprep.subr.bf16.mxu0 0
    %288 = vmatpush2.bf16.msra.mxu0 0
    %289 = vmatprep.subr.bf16.mxu0 0
    %290 = vmatpush2.bf16.msra.mxu0 0
    %291 = vmatprep.subr.bf16.mxu0 0
    %292 = vmatpush2.bf16.msra.mxu0 0
    %293 = vmatprep.subr.bf16.mxu0 0
    %294 = vmatpush2.bf16.msra.mxu0 0
    %295 = vmatprep.subr.bf16.mxu0 0
    %296 = vmatpush2.bf16.msra.mxu0 0
    %297 = vmatprep.subr.bf16.mxu0 0
    %298 = vmatpush2.bf16.msra.mxu0 0
    %299 = vmatprep.subr.bf16.mxu0 0
    %300 = vmatpush2.bf16.msra.mxu0 0
    %301 = vmatprep.subr.bf16.mxu0 0
    %302 = vmatpush2.bf16.msra.mxu0 0
    %303 = vmatprep.mubr.bf16.mxu0 0
    %304 = vmatmul.mubr.bf16.gmra.mxu0 %v269
    %v305 = vpop.f32.mrf.mxu0
    %v306 = vadd.f32 %v230, %v305
    %v307 = vpop.f32.mrf.mxu0
    %v308 = vadd.f32 %v234, %v307
    %v309 = vpop.f32.mrf.mxu0
    %v310 = vpop.f32.mrf.mxu0
    %311 = vdwg.mxu0
    %v312 = vmax.f32 %v306, 0.0
    %v313 = vmax.f32 %v308, 0.0
    %v314 = vpack.c.bf16 %v312, %v312
    %v315 = vpack.c.bf16 %v313, %v313
    %v316 = vld [vmem:[#allocation8] sm:$0xff]
    %v317 = vld [vmem:[#allocation8 + $0x8] sm:$0xff]
    %v318 = vld [vmem:[#allocation8 + $0x10] sm:$0xff]
    %v319 = vld [vmem:[#allocation8 + $0x18] sm:$0xff]
    %v320 = vld [vmem:[#allocation8 + $0x20] sm:$0xff]
    %v321 = vld [vmem:[#allocation8 + $0x28] sm:$0xff]
    %v322 = vld [vmem:[#allocation8 + $0x30] sm:$0xff]
    %v323 = vld [vmem:[#allocation8 + $0x38] sm:$0xff]
    %v324 = vld [vmem:[#allocation8 + $0x40] sm:$0xff]
    %v325 = vld [vmem:[#allocation8 + $0x48] sm:$0xff]
    %v326 = vld [vmem:[#allocation8 + $0x50] sm:$0xff]
    %v327 = vld [vmem:[#allocation8 + $0x58] sm:$0xff]
    %v328 = vld [vmem:[#allocation8 + $0x60] sm:$0xff]
    %v329 = vld [vmem:[#allocation8 + $0x68] sm:$0xff]
    %v330 = vld [vmem:[#allocation8 + $0x70] sm:$0xff]
    %v331 = vld [vmem:[#allocation8 + $0x78] sm:$0xff]
    %v332 = vld [vmem:[#allocation8 + $0x80] sm:$0xff]
    %v333 = vld [vmem:[#allocation8 + $0x88] sm:$0xff]
    %v334 = vld [vmem:[#allocation8 + $0x90] sm:$0xff]
    %v335 = vld [vmem:[#allocation8 + $0x98] sm:$0xff]
    %v336 = vld [vmem:[#allocation8 + $0xa0] sm:$0xff]
    %v337 = vld [vmem:[#allocation8 + $0xa8] sm:$0xff]
    %v338 = vld [vmem:[#allocation8 + $0xb0] sm:$0xff]
    %v339 = vld [vmem:[#allocation8 + $0xb8] sm:$0xff]
    %v340 = vld [vmem:[#allocation8 + $0xc0] sm:$0xff]
    %v341 = vld [vmem:[#allocation8 + $0xc8] sm:$0xff]
    %v342 = vld [vmem:[#allocation8 + $0xd0] sm:$0xff]
    %v343 = vld [vmem:[#allocation8 + $0xd8] sm:$0xff]
    %v344 = vld [vmem:[#allocation8 + $0xe0] sm:$0xff]
    %v345 = vld [vmem:[#allocation8 + $0xe8] sm:$0xff]
    %v346 = vld [vmem:[#allocation8 + $0xf0] sm:$0xff]
    %v347 = vld [vmem:[#allocation8 + $0xf8] sm:$0xff]
    %v380 = vunpack.c.l.b16 %v316
    %v381 = vunpack.c.h.b16 %v316
    %v382 = vunpack.c.l.b16 %v317
    %v383 = vunpack.c.h.b16 %v317
    %v384 = vunpack.c.l.b16 %v318
    %v385 = vunpack.c.h.b16 %v318
    %v386 = vunpack.c.l.b16 %v319
    %v387 = vunpack.c.h.b16 %v319
    %v388 = vunpack.c.l.b16 %v320
    %v389 = vunpack.c.h.b16 %v320
    %v390 = vunpack.c.l.b16 %v321
    %v391 = vunpack.c.h.b16 %v321
    %v392 = vunpack.c.l.b16 %v322
    %v393 = vunpack.c.h.b16 %v322
    %v394 = vunpack.c.l.b16 %v323
    %v395 = vunpack.c.h.b16 %v323
    %v396 = vunpack.c.l.b16 %v324
    %v397 = vunpack.c.h.b16 %v324
    %v398 = vunpack.c.l.b16 %v325
    %v399 = vunpack.c.h.b16 %v325
    %v400 = vunpack.c.l.b16 %v326
    %v401 = vunpack.c.h.b16 %v326
    %v402 = vunpack.c.l.b16 %v327
    %v403 = vunpack.c.h.b16 %v327
    %v404 = vunpack.c.l.b16 %v328
    %v405 = vunpack.c.h.b16 %v328
    %v406 = vunpack.c.l.b16 %v329
    %v407 = vunpack.c.h.b16 %v329
    %v408 = vunpack.c.l.b16 %v330
    %v409 = vunpack.c.h.b16 %v330
    %v410 = vunpack.c.l.b16 %v331
    %v411 = vunpack.c.h.b16 %v331
    %v412 = vunpack.c.l.b16 %v332
    %v413 = vunpack.c.h.b16 %v332
    %v414 = vunpack.c.l.b16 %v333
    %v415 = vunpack.c.h.b16 %v333
    %v416 = vunpack.c.l.b16 %v334
    %v417 = vunpack.c.h.b16 %v334
    %v418 = vunpack.c.l.b16 %v335
    %v419 = vunpack.c.h.b16 %v335
    %v420 = vunpack.c.l.b16 %v336
    %v421 = vunpack.c.h.b16 %v336
    %v422 = vunpack.c.l.b16 %v337
    %v423 = vunpack.c.h.b16 %v337
    %v424 = vunpack.c.l.b16 %v338
    %v425 = vunpack.c.h.b16 %v338
    %v426 = vunpack.c.l.b16 %v339
    %v427 = vunpack.c.h.b16 %v339
    %v428 = vunpack.c.l.b16 %v340
    %v429 = vunpack.c.h.b16 %v340
    %v430 = vunpack.c.l.b16 %v341
    %v431 = vunpack.c.h.b16 %v341
    %v432 = vunpack.c.l.b16 %v342
    %v433 = vunpack.c.h.b16 %v342
    %v434 = vunpack.c.l.b16 %v343
    %v435 = vunpack.c.h.b16 %v343
    %v436 = vunpack.c.l.b16 %v344
    %v437 = vunpack.c.h.b16 %v344
    %v438 = vunpack.c.l.b16 %v345
    %v439 = vunpack.c.h.b16 %v345
    %v440 = vunpack.c.l.b16 %v346
    %v441 = vunpack.c.h.b16 %v346
    %v442 = vunpack.c.l.b16 %v347
    %v443 = vunpack.c.h.b16 %v347
    %v444 = vpack.c.b16 %v382, %v380
    %v445 = vpack.c.b16 %v383, %v381
    %v446 = vpack.c.b16 %v386, %v384
    %v447 = vpack.c.b16 %v387, %v385
    %v448 = vpack.c.b16 %v390, %v388
    %v449 = vpack.c.b16 %v391, %v389
    %v450 = vpack.c.b16 %v394, %v392
    %v451 = vpack.c.b16 %v395, %v393
    %v452 = vpack.c.b16 %v398, %v396
    %v453 = vpack.c.b16 %v399, %v397
    %v454 = vpack.c.b16 %v402, %v400
    %v455 = vpack.c.b16 %v403, %v401
    %v456 = vpack.c.b16 %v406, %v404
    %v457 = vpack.c.b16 %v407, %v405
    %v458 = vpack.c.b16 %v410, %v408
    %v459 = vpack.c.b16 %v411, %v409
    %v460 = vpack.c.b16 %v414, %v412
    %v461 = vpack.c.b16 %v415, %v413
    %v462 = vpack.c.b16 %v418, %v416
    %v463 = vpack.c.b16 %v419, %v417
    %v464 = vpack.c.b16 %v422, %v420
    %v465 = vpack.c.b16 %v423, %v421
    %v466 = vpack.c.b16 %v426, %v424
    %v467 = vpack.c.b16 %v427, %v425
    %v468 = vpack.c.b16 %v430, %v428
    %v469 = vpack.c.b16 %v431, %v429
    %v470 = vpack.c.b16 %v434, %v432
    %v471 = vpack.c.b16 %v435, %v433
    %v472 = vpack.c.b16 %v438, %v436
    %v473 = vpack.c.b16 %v439, %v437
    %v474 = vpack.c.b16 %v442, %v440
    %v475 = vpack.c.b16 %v443, %v441
    %508 = vmatprep.subr.bf16.mxu0 %v459
    %509 = vmatpush1.bf16.msra.mxu0 %v458
    %510 = vmatprep.subr.bf16.mxu0 %v457
    %511 = vmatpush1.bf16.msra.mxu0 %v456
    %512 = vmatprep.subr.bf16.mxu0 %v455
    %513 = vmatpush1.bf16.msra.mxu0 %v454
    %514 = vmatprep.subr.bf16.mxu0 %v453
    %515 = vmatpush1.bf16.msra.mxu0 %v452
    %516 = vmatprep.subr.bf16.mxu0 %v451
    %517 = vmatpush1.bf16.msra.mxu0 %v450
    %518 = vmatprep.subr.bf16.mxu0 %v449
    %519 = vmatpush1.bf16.msra.mxu0 %v448
    %520 = vmatprep.subr.bf16.mxu0 %v447
    %521 = vmatpush1.bf16.msra.mxu0 %v446
    %522 = vmatprep.subr.bf16.mxu0 %v445
    %523 = vmatpush1.bf16.msra.mxu0 %v444
    %524 = vmatprep.subr.bf16.mxu0 %v475
    %525 = vmatpush2.bf16.msra.mxu0 %v474
    %526 = vmatprep.subr.bf16.mxu0 %v473
    %527 = vmatpush2.bf16.msra.mxu0 %v472
    %528 = vmatprep.subr.bf16.mxu0 %v471
    %529 = vmatpush2.bf16.msra.mxu0 %v470
    %530 = vmatprep.subr.bf16.mxu0 %v469
    %531 = vmatpush2.bf16.msra.mxu0 %v468
    %532 = vmatprep.subr.bf16.mxu0 %v467
    %533 = vmatpush2.bf16.msra.mxu0 %v466
    %534 = vmatprep.subr.bf16.mxu0 %v465
    %535 = vmatpush2.bf16.msra.mxu0 %v464
    %536 = vmatprep.subr.bf16.mxu0 %v463
    %537 = vmatpush2.bf16.msra.mxu0 %v462
    %538 = vmatprep.subr.bf16.mxu0 %v461
    %539 = vmatpush2.bf16.msra.mxu0 %v460
    %540 = vmatprep.mubr.bf16.mxu0 %v315
    %541 = vmatmul.mubr.bf16.gmra.mxu0 %v314
    %v542 = vpop.f32.mrf.mxu0
    %v543 = vadd.f32 %v173, %v542
    %v544 = vpop.f32.mrf.mxu0
    %v545 = vadd.f32 %v175, %v544
    %v546 = vpop.f32.mrf.mxu0
    %v547 = vpop.f32.mrf.mxu0
    %548 = vdwg.mxu0
    %v549 = vld [vmem:[%s5] sm:$0x3]
    %v551 = vlaneseq
    %v552 = vshrl.u32 %v551, 7
    %v553 = vsub.s32 0, %v552
    %v554 = vrot.slane %v549, %v553
    %v555 = vlaneseq
    %v556 = vshrl.u32 %v555, 7
    %v557 = vsub.s32 1, %v556
    %v558 = vrot.slane %v549, %v557
    %v561 = vadd.f32 %v543, %v554
    %v562 = vadd.f32 %v545, %v558
    %v563 = vmax.f32 %v561, 0.0
    %v564 = vmax.f32 %v562, 0.0
    %v565 = vpack.c.bf16 %v563, %v563
    %v566 = vpack.c.bf16 %v564, %v564
    %v567 = vld [vmem:[#allocation10] sm:$0xf]
    %v568 = vld [vmem:[#allocation10 + $0x4] sm:$0xf]
    %v569 = vld [vmem:[#allocation10 + $0x8] sm:$0xf]
    %v570 = vld [vmem:[#allocation10 + $0xc] sm:$0xf]
    %v571 = vld [vmem:[#allocation10 + $0x10] sm:$0xf]
    %v572 = vld [vmem:[#allocation10 + $0x14] sm:$0xf]
    %v573 = vld [vmem:[#allocation10 + $0x18] sm:$0xf]
    %v574 = vld [vmem:[#allocation10 + $0x1c] sm:$0xf]
    %v575 = vld [vmem:[#allocation10 + $0x20] sm:$0xf]
    %v576 = vld [vmem:[#allocation10 + $0x24] sm:$0xf]
    %v577 = vld [vmem:[#allocation10 + $0x28] sm:$0xf]
    %v578 = vld [vmem:[#allocation10 + $0x2c] sm:$0xf]
    %v579 = vld [vmem:[#allocation10 + $0x30] sm:$0xf]
    %v580 = vld [vmem:[#allocation10 + $0x34] sm:$0xf]
    %v581 = vld [vmem:[#allocation10 + $0x38] sm:$0xf]
    %v582 = vld [vmem:[#allocation10 + $0x3c] sm:$0xf]
    %v583 = vld [vmem:[#allocation10 + $0x40] sm:$0xf]
    %v584 = vld [vmem:[#allocation10 + $0x44] sm:$0xf]
    %v585 = vld [vmem:[#allocation10 + $0x48] sm:$0xf]
    %v586 = vld [vmem:[#allocation10 + $0x4c] sm:$0xf]
    %v587 = vld [vmem:[#allocation10 + $0x50] sm:$0xf]
    %v588 = vld [vmem:[#allocation10 + $0x54] sm:$0xf]
    %v589 = vld [vmem:[#allocation10 + $0x58] sm:$0xf]
    %v590 = vld [vmem:[#allocation10 + $0x5c] sm:$0xf]
    %v591 = vld [vmem:[#allocation10 + $0x60] sm:$0xf]
    %v592 = vld [vmem:[#allocation10 + $0x64] sm:$0xf]
    %v593 = vld [vmem:[#allocation10 + $0x68] sm:$0xf]
    %v594 = vld [vmem:[#allocation10 + $0x6c] sm:$0xf]
    %v595 = vld [vmem:[#allocation10 + $0x70] sm:$0xf]
    %v596 = vld [vmem:[#allocation10 + $0x74] sm:$0xf]
    %v597 = vld [vmem:[#allocation10 + $0x78] sm:$0xf]
    %v598 = vld [vmem:[#allocation10 + $0x7c] sm:$0xf]
    %v631 = vunpack.c.l.b16 %v567
    %v632 = vunpack.c.l.b16 %v568
    %v633 = vunpack.c.l.b16 %v569
    %v634 = vunpack.c.l.b16 %v570
    %v635 = vunpack.c.l.b16 %v571
    %v636 = vunpack.c.l.b16 %v572
    %v637 = vunpack.c.l.b16 %v573
    %v638 = vunpack.c.l.b16 %v574
    %v639 = vunpack.c.l.b16 %v575
    %v640 = vunpack.c.l.b16 %v576
    %v641 = vunpack.c.l.b16 %v577
    %v642 = vunpack.c.l.b16 %v578
    %v643 = vunpack.c.l.b16 %v579
    %v644 = vunpack.c.l.b16 %v580
    %v645 = vunpack.c.l.b16 %v581
    %v646 = vunpack.c.l.b16 %v582
    %v647 = vunpack.c.l.b16 %v583
    %v648 = vunpack.c.l.b16 %v584
    %v649 = vunpack.c.l.b16 %v585
    %v650 = vunpack.c.l.b16 %v586
    %v651 = vunpack.c.l.b16 %v587
    %v652 = vunpack.c.l.b16 %v588
    %v653 = vunpack.c.l.b16 %v589
    %v654 = vunpack.c.l.b16 %v590
    %v655 = vunpack.c.l.b16 %v591
    %v656 = vunpack.c.l.b16 %v592
    %v657 = vunpack.c.l.b16 %v593
    %v658 = vunpack.c.l.b16 %v594
    %v659 = vunpack.c.l.b16 %v595
    %v660 = vunpack.c.l.b16 %v596
    %v661 = vunpack.c.l.b16 %v597
    %v662 = vunpack.c.l.b16 %v598
    %v663 = vpack.c.b16 %v632, %v631
    %v664 = vpack.c.b16 %v634, %v633
    %v665 = vpack.c.b16 %v636, %v635
    %v666 = vpack.c.b16 %v638, %v637
    %v667 = vpack.c.b16 %v640, %v639
    %v668 = vpack.c.b16 %v642, %v641
    %v669 = vpack.c.b16 %v644, %v643
    %v670 = vpack.c.b16 %v646, %v645
    %v671 = vpack.c.b16 %v648, %v647
    %v672 = vpack.c.b16 %v650, %v649
    %v673 = vpack.c.b16 %v652, %v651
    %v674 = vpack.c.b16 %v654, %v653
    %v675 = vpack.c.b16 %v656, %v655
    %v676 = vpack.c.b16 %v658, %v657
    %v677 = vpack.c.b16 %v660, %v659
    %v678 = vpack.c.b16 %v662, %v661
    %695 = vmatprep.subr.bf16.mxu0 0
    %696 = vmatpush1.bf16.msra.mxu0 %v670
    %697 = vmatprep.subr.bf16.mxu0 0
    %698 = vmatpush1.bf16.msra.mxu0 %v669
    %699 = vmatprep.subr.bf16.mxu0 0
    %700 = vmatpush1.bf16.msra.mxu0 %v668
    %701 = vmatprep.subr.bf16.mxu0 0
    %702 = vmatpush1.bf16.msra.mxu0 %v667
    %703 = vmatprep.subr.bf16.mxu0 0
    %704 = vmatpush1.bf16.msra.mxu0 %v666
    %705 = vmatprep.subr.bf16.mxu0 0
    %706 = vmatpush1.bf16.msra.mxu0 %v665
    %707 = vmatprep.subr.bf16.mxu0 0
    %708 = vmatpush1.bf16.msra.mxu0 %v664
    %709 = vmatprep.subr.bf16.mxu0 0
    %710 = vmatpush1.bf16.msra.mxu0 %v663
    %711 = vmatprep.subr.bf16.mxu0 0
    %712 = vmatpush2.bf16.msra.mxu0 %v678
    %713 = vmatprep.subr.bf16.mxu0 0
    %714 = vmatpush2.bf16.msra.mxu0 %v677
    %715 = vmatprep.subr.bf16.mxu0 0
    %716 = vmatpush2.bf16.msra.mxu0 %v676
    %717 = vmatprep.subr.bf16.mxu0 0
    %718 = vmatpush2.bf16.msra.mxu0 %v675
    %719 = vmatprep.subr.bf16.mxu0 0
    %720 = vmatpush2.bf16.msra.mxu0 %v674
    %721 = vmatprep.subr.bf16.mxu0 0
    %722 = vmatpush2.bf16.msra.mxu0 %v673
    %723 = vmatprep.subr.bf16.mxu0 0
    %724 = vmatpush2.bf16.msra.mxu0 %v672
    %725 = vmatprep.subr.bf16.mxu0 0
    %726 = vmatpush2.bf16.msra.mxu0 %v671
    %727 = vmatprep.mubr.bf16.mxu0 %v566
    %728 = vmatmul.mubr.bf16.gmra.mxu0 %v565
    %v729 = vpop.f32.mrf.mxu0
    %v730 = vadd.f32 %v214, %v729
    %v731 = vpop.f32.mrf.mxu0
    %v732 = vpop.f32.mrf.mxu0
    %v733 = vpop.f32.mrf.mxu0
    %734 = vdwg.mxu0
    %v735 = vld [vmem:[%s7] sm:$0x1]
    %v737 = vlaneseq
    %v738 = vshrl.u32 %v737, 7
    %v739 = vsub.s32 0, %v738
    %v740 = vrot.slane %v735, %v739
    %v742 = vadd.f32 %v730, %v740
    %v743 = vpack.c.bf16 %v742, %v742
    %744 = vst [vmem:[#allocation13] sm:$0xf] %v743
    // Predicated region
    $region62: #{tpu_custom_call.1} parent=1 // pred_check
      _
    $region63: #{tpu_custom_call.1} parent=1 // pred_check_branch
      %746 = sbr.rel (0) target = $region65
    $region64: #{tpu_custom_call.1} parent=1 // pred_region
      %s748 = ssub.s32 64, 64
      %749 = vsyncadd [#allocation4], %s748
      %s751 = sshll.u32 [#allocation13], 4
      %s752 = int_to_ptr.vmem [resolvable:$true] %s751
      %754 = dma.vmem_to_hbm [thread:$0]  %s752, 64, %s9, [#allocation4]
    $region65: #{tpu_custom_call.1} parent=1 // pred_fallthru
      _
    // Predicated region
    $region66: #{tpu_custom_call.1} parent=1 // pred_check
      _
    $region67: #{tpu_custom_call.1} parent=1 // pred_check_branch
      %756 = sbr.rel (0) target = $region69
    $region68: #{tpu_custom_call.1} parent=1 // pred_region
      %757 = dma.done [#allocation4], 64
    $region69: #{tpu_custom_call.1} parent=1 // pred_fallthru
      _
    %758 = vsyncpa [#allocation3], 1
    %759 = vsyncpa [#allocation6], 1
    %760 = vsyncpa [#allocation9], 1
    %761 = vsyncpa [#allocation12], 1
    %762 = vsyncpa [#allocation4], 1

</llo_original>
